<compile_context>
chip_gen: v6e
topology: v6e:2x2x1
jax: 0.10.0
libtpu: 0.0.40
codegen_flags: <defaults>
</compile_context>

<pallas_src>
import functools

import jax
import jax.numpy as jnp
import numpy as np
from jax.experimental import pallas as pl
from jax.experimental.pallas import tpu as pltpu


def _round_up(v, m):
    return ((v + m - 1) // m) * m


def _pick_col_tile(Kdim, tn_req):
    """Pick (tn, Kp): lane-dense column tile and padded Kdim.

    Prefers a tn that divides round_up(Kdim, 128) exactly (zero padding
    waste); otherwise keeps the requested tn and pads Kp up to a multiple of
    it (<= tn-128 dead columns of MXU work, cropped afterwards).
    """
    Kp128 = _round_up(Kdim, 128)
    tn_req = max(128, _round_up(min(tn_req, Kp128), 128))
    if Kp128 <= tn_req:
        return Kp128, Kp128
    q = Kp128 // 128
    for d in range(tn_req // 128, 0, -1):
        if q % d == 0 and d * 128 * 2 > tn_req:   # exact divisor, <2x shrink
            return d * 128, Kp128
    return tn_req, _round_up(Kp128, tn_req)


def _fused_matmul_hardswish_kernel(x_ref, w_ref, b_ref, o_ref, *, tm):
    # x_ref : (Mp, Cin)  bf16, fully VMEM-resident across the whole grid
    # w_ref : (Cin, tn)  bf16, one streamed weight column tile
    # b_ref : (1, tn)    f32, per-column bias (bias[c] repeated k*k times)
    # o_ref : (tm, tn)   bf16 output tile (f32 accumulate + epilogue, bf16 store)
    row = pl.multiple_of(pl.program_id(1) * tm, tm)
    x_tile = x_ref[pl.ds(row, tm), :]
    acc = jnp.dot(x_tile, w_ref[...], preferred_element_type=jnp.float32)
    v1 = acc + b_ref[...]                 # conv_transpose output incl. bias
    v4 = jnp.clip(v1 + 3.0, 0.0, 6.0)     # clamp(min=0) then clamp(max=6)
    o_ref[...] = (v1 * v4 * (1.0 / 6.0)).astype(o_ref.dtype)


def prepare_conv_transpose_params(weight, bias, *, tn=1024):
    """Hoisted, call-invariant preprocessing of ConvTranspose2d parameters."""
    Cin, Cout, kh, kw = weight.shape
    assert kh == kw
    k = kh
    Kdim = Cout * k * k
    tn, Kp = _pick_col_tile(Kdim, tn)
    w_flat = jnp.pad(weight.reshape(Cin, Kdim), ((0, 0), (0, Kp - Kdim)))
    w_flat = w_flat.astype(jnp.bfloat16)
    bias_f32 = bias.astype(jnp.float32)
    bias_row = jnp.pad(jnp.repeat(bias_f32, k * k), (0, Kp - Kdim)).reshape(1, Kp)
    return dict(w_flat=w_flat, bias_row=bias_row, bias=bias_f32,
                Cin=Cin, Cout=Cout, k=k, Kdim=Kdim, Kp=Kp, tn=tn)


def _matmul_chunk(x_chunk, w_flat, bias_row, *, tm, tn):
    """One pallas_call over a chunk of M rows.  Returns (Mc, Kp) bf16."""
    Mc, Cin = x_chunk.shape
    Kp = w_flat.shape[1]
    tm_c = min(tm, _round_up(Mc, 8))
    Mp = _round_up(Mc, tm_c)
    x_pad = jnp.pad(x_chunk, ((0, Mp - Mc), (0, 0)))

    grid = (Kp // tn, Mp // tm_c)  # Kdim outer -> each weight tile DMA'd once.

    # Resident x (single-buffered) + double-buffered w/bias/out tiles + slack.
    vmem_needed = (Mp * Cin * 2
                   + 2 * (Cin * tn * 2 + tn * 4 + tm_c * tn * 2)
                   + (8 << 20))
    vmem_limit = int(min(max(vmem_needed, 32 << 20), 96 << 20))

    contrib = pl.pallas_call(
        functools.partial(_fused_matmul_hardswish_kernel, tm=tm_c),
        out_shape=jax.ShapeDtypeStruct((Mp, Kp), jnp.bfloat16),
        grid_spec=pltpu.PrefetchScalarGridSpec(
            num_scalar_prefetch=0,
            grid=grid,
            in_specs=[
                # x: one full block, constant index_map -> resident in VMEM,
                # DMA'd once; single-buffered (it never changes).
                pl.BlockSpec((Mp, Cin), lambda j, i: (0, 0),
                             pipeline_mode=pl.Buffered(1)),
                # weight column tile: constant across inner (M) axis -> each
                # tile streamed from HBM exactly once.
                pl.BlockSpec((Cin, tn), lambda j, i: (0, j)),
                # bias row for this column tile.
                pl.BlockSpec((1, tn), lambda j, i: (0, j)),
            ],
            out_specs=pl.BlockSpec((tm_c, tn), lambda j, i: (i, j)),
        ),
        compiler_params=pltpu.CompilerParams(
            # Kdim "parallel" so a megacore split does not duplicate the
            # weight HBM stream; M "arbitrary".
            dimension_semantics=("parallel", "arbitrary"),
            vmem_limit_bytes=vmem_limit),
        cost_estimate=pl.CostEstimate(
            flops=2 * Mp * Cin * Kp,
            transcendentals=0,
            bytes_accessed=Mp * Cin * 2 + Cin * Kp * 2 + Kp * 4 + Mp * Kp * 2),
    )(x_pad, w_flat, bias_row)
    return contrib[:Mc]


def conv_transpose_hardswish(x, params, stride, *, tm=512,
                             x_resident_budget_bytes=24 << 20):
    """ConvTranspose2d(stride=s, no padding, s >= k) + x*clamp(x+3,0,6)/6.

    x:      (N, Cin, Hin, Win)  float32, NCHW
    params: output of prepare_conv_transpose_params(weight, bias)
    """
    N, Cin, Hin, Win = x.shape
    assert Cin == params["Cin"]
    Cout, k, Kdim = params["Cout"], params["k"], params["Kdim"]
    tn = params["tn"]
    s = stride
    assert s >= k, "non-overlapping placement requires stride >= kernel_size"
    Hout = (Hin - 1) * s + k
    Wout = (Win - 1) * s + k
    M = N * Hin * Win

    # bf16 operands, f32 accumulation (MXU-native); halves x/weight HBM traffic.
    x_flat = jnp.transpose(x, (0, 2, 3, 1)).reshape(M, Cin).astype(jnp.bfloat16)

    # Chunk M so the VMEM-resident x block (single-buffered bf16) stays within
    # budget on every TPU generation (v7x has only 64 MiB physical VMEM).
    rows_per_chunk = max(tm, (x_resident_budget_bytes // (Cin * 2)) // tm * tm)
    pieces = []
    for start in range(0, M, rows_per_chunk):
        stop = min(start + rows_per_chunk, M)
        pieces.append(_matmul_chunk(x_flat[start:stop], params["w_flat"],
                                    params["bias_row"], tm=tm, tn=tn))
    contrib = pieces[0] if len(pieces) == 1 else jnp.concatenate(pieces, axis=0)

    # ---- Placement glue (layout only; footprints never overlap) ------------
    # TODO(synk): replace with a second Pallas kernel writing strided NCHW
    # rows directly (gap pixels generated in-register) to kill the gap-filled
    # intermediate entirely.
    contrib = contrib[:, :Kdim].reshape(N, Hin, Win, Cout, k, k)
    # Transpose BEFORE gap-padding: touches only (k/s)^2 of the padded volume.
    contrib = jnp.transpose(contrib, (0, 3, 1, 4, 2, 5))  # (N,Cout,Hin,k,Win,k)
    gap = s - k
    if gap > 0:
        bias_f32 = params["bias"]
        # Gap pixels see only the bias -> per-channel constant hardswish(bias).
        g = (bias_f32 * jnp.clip(bias_f32 + 3.0, 0.0, 6.0) * (1.0 / 6.0))
        g = g.astype(contrib.dtype)
        contrib = jnp.pad(contrib,
                          ((0, 0), (0, 0), (0, 0), (0, gap), (0, 0), (0, gap)))
        in_k = jnp.arange(s) < k
        mask = in_k[:, None] & in_k[None, :]               # (s, s)
        contrib = jnp.where(mask[None, None, None, :, None, :],
                            contrib, g[None, :, None, None, None, None])
    out = contrib.reshape(N, Cout, Hin * s, Win * s)[:, :, :Hout, :Wout]
    return out.astype(jnp.float32)


if __name__ == "__main__":
    # Scaled-down stand-in for ConvTranspose2d(512, 1025, 56, stride=100) on a
    # (1, 512, 213, 109) input; the kernel is general for stride >= kernel.
    N, Cin, Hin, Win = 1, 16, 6, 5
    Cout, ksz, stride = 9, 4, 7

    key = jax.random.PRNGKey(0)
    k1, k2, k3 = jax.random.split(key, 3)
    x = jax.random.normal(k1, (N, Cin, Hin, Win), jnp.float32)
    weight = jax.random.normal(k2, (Cin, Cout, ksz, ksz), jnp.float32) * 0.1
    bias = jax.random.normal(k3, (Cout,), jnp.float32) * 0.1

    params = prepare_conv_transpose_params(weight, bias)
    out = conv_transpose_hardswish(x, params, stride)
    out = jax.block_until_ready(out)

    # Pure-numpy reference (PyTorch ConvTranspose2d semantics).  The kernel
    # runs the matmul in bf16 with f32 accumulation and stores contrib in
    # bf16, so round the reference operands and result to bf16 as well.
    xn = np.asarray(x.astype(jnp.bfloat16).astype(jnp.float32))
    wn = np.asarray(weight.astype(jnp.bfloat16).astype(jnp.float32))
    bn = np.asarray(bias, np.float32)
    Hout = (Hin - 1) * stride + ksz
    Wout = (Win - 1) * stride + ksz
    ref = np.zeros((N, Cout, Hout, Wout), np.float32)
    for ih in range(Hin):
        for iw in range(Win):
            for kh in range(ksz):
                for kw in range(ksz):
                    ref[:, :, ih * stride + kh, iw * stride + kw] += (
                        xn[:, :, ih, iw] @ wn[:, :, kh, kw])
    ref += bn[None, :, None, None]
    ref = ref * np.clip(ref + 3.0, 0.0, 6.0) / 6.0
    ref = np.asarray(jnp.asarray(ref).astype(jnp.bfloat16).astype(jnp.float32))

    np.testing.assert_allclose(np.asarray(out), ref, rtol=2e-2, atol=2e-2)
    print("KERNEL_OK")
</pallas_src>

<mosaic_0001>
module attributes {stable_mosaic.version = 11 : i64} {
  func.func @_fused_matmul_hardswish_kernel(%arg0: i32, %arg1: i32, %arg2: memref<32x16xbf16, #tpu.memory_space<vmem>>, %arg3: memref<16x256xbf16, #tpu.memory_space<vmem>>, %arg4: memref<1x256xf32, #tpu.memory_space<vmem>>, %arg5: memref<32x256xbf16, #tpu.memory_space<vmem>>) attributes {dimension_semantics = [#tpu.dimension_semantics<parallel>, #tpu.dimension_semantics<arbitrary>], iteration_bounds = array<i64: 1, 1>, scalar_prefetch = 0 : i64, scratch_operands = 0 : i64, tpu.core_type = #tpu.core_type<tc>, window_params = [{pipeline_mode = #tpu.pipeline_mode<synchronous>, transform_indices = @transform_0, window_bounds = array<i64: 32, 16>}, {transform_indices = @transform_1, window_bounds = array<i64: 16, 256>}, {transform_indices = @transform_2, window_bounds = array<i64: 1, 256>}, {transform_indices = @transform_3, window_bounds = array<i64: 32, 256>}]} {
    %c32_i32 = arith.constant 32 : i32
    %0 = arith.muli %arg1, %c32_i32 : i32
    %1 = tpu.assume_multiple %0, 32 : i32
    %2 = arith.index_cast %1 : i32 to index
    %c0 = arith.constant 0 : index
    %3 = vector.load %arg2[%2, %c0] : memref<32x16xbf16, #tpu.memory_space<vmem>>, vector<32x16xbf16>
    %c0_0 = arith.constant 0 : index
    %c0_1 = arith.constant 0 : index
    %4 = vector.load %arg3[%c0_0, %c0_1] : memref<16x256xbf16, #tpu.memory_space<vmem>>, vector<16x256xbf16>
    %cst = arith.constant dense<0.000000e+00> : vector<32x256xf32>
    %5 = tpu.matmul %3, %4, %cst {dimension_numbers = #tpu.dot_dimension_numbers<[1], [0], [0], [1], [0, 0, 1, 1], [], []>} : vector<32x16xbf16>, vector<16x256xbf16>, vector<32x256xf32> -> vector<32x256xf32>
    %c0_2 = arith.constant 0 : index
    %c0_3 = arith.constant 0 : index
    %6 = vector.load %arg4[%c0_2, %c0_3] : memref<1x256xf32, #tpu.memory_space<vmem>>, vector<1x256xf32>
    %7 = vector.broadcast %6 : vector<1x256xf32> to vector<32x256xf32>
    %8 = arith.addf %5, %7 : vector<32x256xf32>
    %cst_4 = arith.constant 3.000000e+00 : f32
    %9 = vector.broadcast %cst_4 : f32 to vector<32x256xf32>
    %10 = arith.addf %8, %9 : vector<32x256xf32>
    %cst_5 = arith.constant 0.000000e+00 : f32
    %cst_6 = arith.constant 6.000000e+00 : f32
    %11 = vector.broadcast %cst_5 : f32 to vector<32x256xf32>
    %12 = arith.maximumf %11, %10 : vector<32x256xf32>
    %13 = vector.broadcast %cst_6 : f32 to vector<32x256xf32>
    %14 = arith.minimumf %13, %12 : vector<32x256xf32>
    %15 = arith.mulf %8, %14 : vector<32x256xf32>
    %cst_7 = arith.constant 0.166666672 : f32
    %16 = vector.broadcast %cst_7 : f32 to vector<32x256xf32>
    %17 = arith.mulf %15, %16 : vector<32x256xf32>
    %18 = arith.truncf %17 : vector<32x256xf32> to vector<32x256xbf16>
    %c0_8 = arith.constant 0 : index
    %c0_9 = arith.constant 0 : index
    %19 = vector.load %arg5[%c0_8, %c0_9] : memref<32x256xbf16, #tpu.memory_space<vmem>>, vector<32x256xbf16>
    tpu.vector_store %arg5[%c0_8, %c0_9], %18 {strides = array<i32>} : memref<32x256xbf16, #tpu.memory_space<vmem>>, vector<32x256xbf16>,
    return
  }
  func.func @transform_0(%arg0: i32, %arg1: i32) -> (i32, i32) {
    %c0_i32 = arith.constant 0 : i32
    %c0_i32_0 = arith.constant 0 : i32
    %c0_i32_1 = arith.constant 0 : i32
    return %c0_i32, %c0_i32_0 : i32, i32
  }
  func.func @transform_1(%arg0: i32, %arg1: i32) -> (i32, i32) {
    %c0_i32 = arith.constant 0 : i32
    %c0_i32_0 = arith.constant 0 : i32
    return %c0_i32, %arg0 : i32, i32
  }
  func.func @transform_2(%arg0: i32, %arg1: i32) -> (i32, i32) {
    %c0_i32 = arith.constant 0 : i32
    %c0_i32_0 = arith.constant 0 : i32
    return %c0_i32, %arg0 : i32, i32
  }
  func.func @transform_3(%arg0: i32, %arg1: i32) -> (i32, i32) {
    %c0_i32 = arith.constant 0 : i32
    return %arg1, %arg0 : i32, i32
  }
}

</mosaic_0001>

<llo_original>
// kernel: tpu_custom_call.1
$region0: #{tpu_custom_call.1}
  #allocation0 [shape = 'u32[]', space=smem, size = 0x4, offset = 0x4, fixed_abs, tag = 'smem constant byte address 0x4 - core index']
  #allocation1 [shape = 'u32[144,128]{1,0:T(1,128)}', space=vmem, size = 0x12000, scoped, tag = 'internal scratch']
  %s0 = inlined_call_operand.vmem [shape: bf16[32,16], index: 0, kind: input, shape index: {}]
  %s1 = inlined_call_operand.vmem [shape: bf16[16,256], index: 1, kind: input, shape index: {}]
  %s2 = inlined_call_operand.vmem [shape: f32[1,256], index: 2, kind: input, shape index: {}]
  %s3 = inlined_call_operand.hbm [shape: bf16[32,256], index: 3, kind: output, shape index: {}]
  %s4 = sld [smem:[#allocation0]]
  $region22: #{tpu_custom_call.1} parent=0
    _
  %s6 = ssub.s32 1, %s4
  %s7 = scalar_select 0, %s6, %s4
  $region1: #{tpu_custom_call.1} parent=0
    #allocation2 [shape = 'u8[16384]{0}', space=vmem, size = 0x4000, scoped, tag = 'output window, operand 0, single buffered']
    #allocation3 [shape = 's32[1]{0}', space=sflag, size = 0x4, scoped, tag = 'scoped memory for tpu_custom_call.1']
    %8 = vsyncpa [#allocation3], 0
    // Predicated region
    $region2: #{tpu_custom_call.1} parent=1 // pred_check
      _
    $region3: #{tpu_custom_call.1} parent=1 // pred_check_branch
      %10 = sbr.rel (0) target = $region5
    $region4: #{tpu_custom_call.1} parent=1 // pred_region
      _
    $region5: #{tpu_custom_call.1} parent=1 // pred_fallthru
      _
    // Predicated region
    $region6: #{tpu_custom_call.1} parent=1 // pred_check
      _
    $region7: #{tpu_custom_call.1} parent=1 // pred_check_branch
      %12 = sbr.rel (0) target = $region9
    $region8: #{tpu_custom_call.1} parent=1 // pred_region
      _
    $region9: #{tpu_custom_call.1} parent=1 // pred_fallthru
      _
    // Predicated region
    $region10: #{tpu_custom_call.1} parent=1 // pred_check
      _
    $region11: #{tpu_custom_call.1} parent=1 // pred_check_branch
      %14 = sbr.rel (0) target = $region13
    $region12: #{tpu_custom_call.1} parent=1 // pred_region
      _
    $region13: #{tpu_custom_call.1} parent=1 // pred_fallthru
      _
    %s16 = smul.u32 0, 32
    %s17 = sshra.s32 %s16, 3
    %s18 = sand.u32 %s16, 7
    %s19 = smul.addr %s17, 4
    %s20 = scalar_lea.vmem %s0, %s19
    %v21 = vld [vmem:[%s20] sm:$0xf]
    %v22 = vld [vmem:[%s20 + $0x4] sm:$0xf]
    %v23 = vld [vmem:[%s20 + $0x8] sm:$0xf]
    %v24 = vld [vmem:[%s20 + $0xc] sm:$0xf]
    %v25 = vld [vmem:[%s1] sm:$0xff]
    %v26 = vld [vmem:[%s1 + $0x8] sm:$0xff]
    %v27 = vld [vmem:[%s2] sm:$0x3]
    %v29 = vlaneseq
    %v30 = vshrl.u32 %v29, 7
    %v31 = vsub.s32 0, %v30
    %v32 = vrot.slane %v27, %v31
    %v33 = vlaneseq
    %v34 = vshrl.u32 %v33, 7
    %v35 = vsub.s32 1, %v34
    %v36 = vrot.slane %v27, %v35
    %v43 = vunpack.c.l.b16 %v21
    %v44 = vunpack.c.l.b16 %v22
    %v45 = vunpack.c.l.b16 %v23
    %v46 = vunpack.c.l.b16 %v24
    %v47 = vpack.c.b16 %v44, %v43
    %v48 = vpack.c.b16 %v46, %v45
    %v51 = vunpack.c.l.b16 %v25
    %v52 = vunpack.c.h.b16 %v25
    %v53 = vunpack.c.l.b16 %v26
    %v54 = vunpack.c.h.b16 %v26
    %v55 = vpack.c.b16 %v53, %v51
    %v56 = vpack.c.b16 %v54, %v52
    %vm59 = vcmask 130048
    %v61 = vsel %vm59, %v47, 0
    %v64 = vsel %vm59, %v48, 0
    %66 = vmatprep.subr.bf16.mxu0 0
    %67 = vmatpush1.bf16.msra.mxu0 0
    %68 = vmatprep.subr.bf16.mxu0 0
    %69 = vmatpush1.bf16.msra.mxu0 0
    %70 = vmatprep.subr.bf16.mxu0 0
    %71 = vmatpush1.bf16.msra.mxu0 0
    %72 = vmatprep.subr.bf16.mxu0 0
    %73 = vmatpush1.bf16.msra.mxu0 0
    %74 = vmatprep.subr.bf16.mxu0 0
    %75 = vmatpush1.bf16.msra.mxu0 0
    %76 = vmatprep.subr.bf16.mxu0 0
    %77 = vmatpush1.bf16.msra.mxu0 0
    %78 = vmatprep.subr.bf16.mxu0 0
    %79 = vmatpush1.bf16.msra.mxu0 0
    %80 = vmatprep.subr.bf16.mxu0 %v56
    %81 = vmatpush1.bf16.msra.mxu0 %v55
    %82 = vmatprep.subr.bf16.mxu0 0
    %83 = vmatpush2.bf16.msra.mxu0 0
    %84 = vmatprep.subr.bf16.mxu0 0
    %85 = vmatpush2.bf16.msra.mxu0 0
    %86 = vmatprep.subr.bf16.mxu0 0
    %87 = vmatpush2.bf16.msra.mxu0 0
    %88 = vmatprep.subr.bf16.mxu0 0
    %89 = vmatpush2.bf16.msra.mxu0 0
    %90 = vmatprep.subr.bf16.mxu0 0
    %91 = vmatpush2.bf16.msra.mxu0 0
    %92 = vmatprep.subr.bf16.mxu0 0
    %93 = vmatpush2.bf16.msra.mxu0 0
    %94 = vmatprep.subr.bf16.mxu0 0
    %95 = vmatpush2.bf16.msra.mxu0 0
    %96 = vmatprep.subr.bf16.mxu0 0
    %97 = vmatpush2.bf16.msra.mxu0 0
    %98 = vmatprep.mubr.bf16.mxu0 0
    %99 = vmatmul.mubr.bf16.gmra.mxu0 %v61
    %v100 = vpop.f32.mrf.mxu0
    %v101 = vadd.f32 %v32, %v100
    %v102 = vpop.f32.mrf.mxu0
    %v103 = vadd.f32 %v36, %v102
    %v104 = vpop.f32.mrf.mxu0
    %v105 = vadd.f32 %v32, %v104
    %v106 = vpop.f32.mrf.mxu0
    %v107 = vadd.f32 %v36, %v106
    %108 = vmatprep.mubr.bf16.mxu0 0
    %109 = vmatmul.mubr.bf16.gmra.mxu0 %v64
    %v110 = vpop.f32.mrf.mxu0
    %v111 = vadd.f32 %v32, %v110
    %v112 = vpop.f32.mrf.mxu0
    %v113 = vadd.f32 %v36, %v112
    %v114 = vpop.f32.mrf.mxu0
    %v115 = vadd.f32 %v32, %v114
    %v116 = vpop.f32.mrf.mxu0
    %v117 = vadd.f32 %v36, %v116
    %118 = vdwg.mxu0
    %v119 = vadd.f32 %v101, 3.0
    %v120 = vadd.f32 %v103, 3.0
    %v121 = vadd.f32 %v105, 3.0
    %v122 = vadd.f32 %v107, 3.0
    %v123 = vadd.f32 %v111, 3.0
    %v124 = vadd.f32 %v113, 3.0
    %v125 = vadd.f32 %v115, 3.0
    %v126 = vadd.f32 %v117, 3.0
    %v127 = vmax.f32 %v119, 0.0
    %v128 = vmax.f32 %v120, 0.0
    %v129 = vmax.f32 %v121, 0.0
    %v130 = vmax.f32 %v122, 0.0
    %v131 = vmax.f32 %v123, 0.0
    %v132 = vmax.f32 %v124, 0.0
    %v133 = vmax.f32 %v125, 0.0
    %v134 = vmax.f32 %v126, 0.0
    %v135 = vmin.f32 %v127, 6.0
    %v136 = vmin.f32 %v128, 6.0
    %v137 = vmin.f32 %v129, 6.0
    %v138 = vmin.f32 %v130, 6.0
    %v139 = vmin.f32 %v131, 6.0
    %v140 = vmin.f32 %v132, 6.0
    %v141 = vmin.f32 %v133, 6.0
    %v142 = vmin.f32 %v134, 6.0
    %v143 = vmul.f32 %v101, %v135
    %v144 = vmul.f32 %v103, %v136
    %v145 = vmul.f32 %v105, %v137
    %v146 = vmul.f32 %v107, %v138
    %v147 = vmul.f32 %v111, %v139
    %v148 = vmul.f32 %v113, %v140
    %v149 = vmul.f32 %v115, %v141
    %v150 = vmul.f32 %v117, %v142
    %v151 = vmul.f32 %v143, 0.16666667
    %v152 = vmul.f32 %v144, 0.16666667
    %v153 = vmul.f32 %v145, 0.16666667
    %v154 = vmul.f32 %v146, 0.16666667
    %v155 = vmul.f32 %v147, 0.16666667
    %v156 = vmul.f32 %v148, 0.16666667
    %v157 = vmul.f32 %v149, 0.16666667
    %v158 = vmul.f32 %v150, 0.16666667
    %v159 = vpack.c.bf16 %v153, %v151
    %v160 = vpack.c.bf16 %v154, %v152
    %v161 = vpack.c.bf16 %v157, %v155
    %v162 = vpack.c.bf16 %v158, %v156
    %v167 = vunpack.c.l.b16 %v159
    %v168 = vunpack.c.l.b16 %v160
    %v169 = vunpack.c.h.b16 %v159
    %v170 = vunpack.c.h.b16 %v160
    %v171 = vunpack.c.l.b16 %v161
    %v172 = vunpack.c.l.b16 %v162
    %v173 = vunpack.c.h.b16 %v161
    %v174 = vunpack.c.h.b16 %v162
    %v175 = vpack.c.b16 %v168, %v167
    %v176 = vpack.c.b16 %v170, %v169
    %v177 = vpack.c.b16 %v172, %v171
    %v178 = vpack.c.b16 %v174, %v173
    %183 = vst [vmem:[#allocation2] sm:$0xff] %v175
    %184 = vst [vmem:[#allocation2 + $0x8] sm:$0xff] %v176
    %185 = vst [vmem:[#allocation2 + $0x10] sm:$0xff] %v177
    %186 = vst [vmem:[#allocation2 + $0x18] sm:$0xff] %v178
    // Predicated region
    $region14: #{tpu_custom_call.1} parent=1 // pred_check
      _
    $region15: #{tpu_custom_call.1} parent=1 // pred_check_branch
      %188 = sbr.rel (0) target = $region17
    $region16: #{tpu_custom_call.1} parent=1 // pred_region
      %s190 = ssub.s32 512, 512
      %191 = vsyncadd [#allocation3], %s190
      %s192 = sshll.u32 [#allocation2], 4
      %s193 = int_to_ptr.vmem [resolvable:$true] %s192
      %198 = dma.vmem_to_hbm [thread:$0]  %s193, 512, %s3, [#allocation3], 128, 128, 8
    $region17: #{tpu_custom_call.1} parent=1 // pred_fallthru
      _
    // Predicated region
    $region18: #{tpu_custom_call.1} parent=1 // pred_check
      _
    $region19: #{tpu_custom_call.1} parent=1 // pred_check_branch
      %200 = sbr.rel (0) target = $region21
    $region20: #{tpu_custom_call.1} parent=1 // pred_region
      %201 = dma.done [#allocation3], 512
    $region21: #{tpu_custom_call.1} parent=1 // pred_fallthru
      _
    %202 = vsyncpa [#allocation3], 1

</llo_original>
